<compile_context>
chip_gen: v6e
topology: v6e:2x2x1
jax: 0.10.0
libtpu: 0.0.40
codegen_flags: <defaults>
</compile_context>

<pallas_src>
from typing import NamedTuple, Tuple

import jax
import jax.numpy as jnp
from jax.experimental import pallas as pl
from jax.experimental.pallas import tpu as pltpu


# ----------------------------------------------------------------------------
# Tiling helpers
# ----------------------------------------------------------------------------
_HIDDEN_TILE_BUDGET_BYTES = 2 * 1024 * 1024  # per hidden-input VMEM buffer


def _batch_tile(B, itemsize):
    """Sublane-aligned batch tile: 8 rows for 4-byte dtypes, 16 for 2-byte."""
    align = 16 if itemsize == 2 else 8
    return align if B >= align else B  # Bt == B (full dim) is always legal


def _choose_seq_tile(S, H, Bt, itemsize):
    """Largest St that divides S, is a multiple of 8 (or == S), and keeps a
    (Bt, St, H) hidden buffer under the per-buffer VMEM budget."""
    per_token = max(1, Bt * H * itemsize)
    max_st = max(8, _HIDDEN_TILE_BUDGET_BYTES // per_token)
    if S <= max_st:
        return S
    st = (max_st // 8) * 8
    while st >= 8:
        if S % st == 0:
            return st
        st -= 8
    # TODO(synk): no 8-aligned divisor of S fits the VMEM budget; fall back to
    # the full sequence (only hit for unusual S; may exceed the soft budget).
    return S


# ----------------------------------------------------------------------------
# Kernels
# ----------------------------------------------------------------------------
def _cls_kernel(h_ref, out_ref):
    # h_ref: (Bt, S_win, H) — only a small token-0 window was DMA'd.
    out_ref[...] = h_ref[:, 0, :]


def _masked_avg_kernel(h_ref, m_ref, invd_ref, out_ref, acc_ref):
    # acc[b, h] += sum_s h[b, s, h] * mask[b, s];   out = acc * (1 / mask.sum(-1))
    s = pl.program_id(1)

    @pl.when(s == 0)
    def _():
        acc_ref[...] = jnp.zeros_like(acc_ref)

    h = h_ref[...].astype(jnp.float32)        # (Bt, St, H)
    m = m_ref[...].astype(jnp.float32)        # (Bt, St, 1)
    acc_ref[...] += jnp.sum(h * m, axis=1)    # (Bt, H)

    @pl.when(s == pl.num_programs(1) - 1)
    def _():
        inv_d = invd_ref[...].astype(jnp.float32)   # (Bt, 1), precomputed 1/den
        out_ref[...] = (acc_ref[...] * inv_d).astype(out_ref.dtype)


def _masked_avg2_kernel(h1_ref, h2_ref, m_ref, invd_ref, out_ref, acc_ref):
    # Same as above on (h1 + h2) / 2.
    s = pl.program_id(1)

    @pl.when(s == 0)
    def _():
        acc_ref[...] = jnp.zeros_like(acc_ref)

    h = (h1_ref[...].astype(jnp.float32) + h2_ref[...].astype(jnp.float32)) * 0.5
    m = m_ref[...].astype(jnp.float32)
    acc_ref[...] += jnp.sum(h * m, axis=1)

    @pl.when(s == pl.num_programs(1) - 1)
    def _():
        inv_d = invd_ref[...].astype(jnp.float32)
        out_ref[...] = (acc_ref[...] * inv_d).astype(out_ref.dtype)


# ----------------------------------------------------------------------------
# pallas_call wrappers
# ----------------------------------------------------------------------------
@jax.jit
def cls_pool(last_hidden):
    B, S, H = last_hidden.shape
    itemsize = jnp.dtype(last_hidden.dtype).itemsize
    Bt = _batch_tile(B, itemsize)
    # Smallest sublane-aligned window containing token 0 (1 would break (8,128)).
    s_align = 16 if itemsize == 2 else 8
    S_win = S if S < s_align else s_align

    return pl.pallas_call(
        _cls_kernel,
        out_shape=jax.ShapeDtypeStruct((B, H), last_hidden.dtype),
        grid=(pl.cdiv(B, Bt),),
        in_specs=[pl.BlockSpec((Bt, S_win, H), lambda b: (b, 0, 0))],
        out_specs=pl.BlockSpec((Bt, H), lambda b: (b, 0)),
        compiler_params=pltpu.CompilerParams(dimension_semantics=("parallel",)),
    )(last_hidden)


def _masked_avg_call(attention_mask, hiddens):
    h0 = hiddens[0]
    B, S, H = h0.shape
    dt = h0.dtype
    itemsize = jnp.dtype(dt).itemsize

    Bt = _batch_tile(B, itemsize)
    St = _choose_seq_tile(S, H, Bt, itemsize)
    n_b = pl.cdiv(B, Bt)
    n_s = S // St  # St divides S by construction

    mask_f = attention_mask.astype(jnp.float32)
    mask3 = mask_f.reshape(B, S, 1)                       # lane-safe mask tiles
    inv_den = 1.0 / mask_f.sum(axis=-1, keepdims=True)    # (B, 1), XLA-side

    h_spec = pl.BlockSpec((Bt, St, H), lambda b, s: (b, s, 0))
    m_spec = pl.BlockSpec((Bt, St, 1), lambda b, s: (b, s, 0))
    d_spec = pl.BlockSpec((Bt, 1), lambda b, s: (b, 0))
    o_spec = pl.BlockSpec((Bt, H), lambda b, s: (b, 0))   # resident across s

    kernel = _masked_avg_kernel if len(hiddens) == 1 else _masked_avg2_kernel
    in_specs = [h_spec] * len(hiddens) + [m_spec, d_spec]

    return pl.pallas_call(
        kernel,
        out_shape=jax.ShapeDtypeStruct((B, H), dt),
        grid=(n_b, n_s),
        in_specs=in_specs,
        out_specs=o_spec,
        scratch_shapes=[pltpu.VMEM((Bt, H), jnp.float32)],
        compiler_params=pltpu.CompilerParams(
            dimension_semantics=("parallel", "arbitrary")),
    )(*hiddens, mask3, inv_den)


@jax.jit
def masked_avg_pool(attention_mask, last_hidden):
    return _masked_avg_call(attention_mask, (last_hidden,))


@jax.jit
def masked_avg2_pool(attention_mask, hidden_a, hidden_b):
    return _masked_avg_call(attention_mask, (hidden_a, hidden_b))


# ----------------------------------------------------------------------------
# Pooler module (mirrors the PyTorch class)
# ----------------------------------------------------------------------------
class ModelOutputs(NamedTuple):
    last_hidden_state: jax.Array            # (B, S, H)
    pooler_output: jax.Array                # (B, H) -- unused by Pooler.forward
    hidden_states: Tuple[jax.Array, ...]    # tuple of (B, S, H)


class Pooler:
    """
    'cls' / 'cls_before_pooler': [CLS] representation (token 0).
    'avg': masked average of last layer hidden states.
    'avg_top2': masked average of the mean of the last two layers.
    'avg_first_last': masked average of the mean of the first and last layers.
    """

    def __init__(self, pooler_type):
        assert pooler_type in [
            "cls", "cls_before_pooler", "avg", "avg_top2", "avg_first_last"
        ], "unrecognized pooling type %s" % pooler_type
        self.pooler_type = pooler_type

    def forward(self, attention_mask, outputs: ModelOutputs):
        last_hidden = outputs.last_hidden_state
        hidden_states = outputs.hidden_states
        if self.pooler_type in ["cls_before_pooler", "cls"]:
            return cls_pool(last_hidden)
        elif self.pooler_type == "avg":
            return masked_avg_pool(attention_mask, last_hidden)
        elif self.pooler_type == "avg_first_last":
            return masked_avg2_pool(attention_mask, hidden_states[0], hidden_states[-1])
        elif self.pooler_type == "avg_top2":
            return masked_avg2_pool(attention_mask, hidden_states[-2], hidden_states[-1])
        else:
            raise NotImplementedError

    __call__ = forward


# ----------------------------------------------------------------------------
# Pure-JAX reference for verification
# ----------------------------------------------------------------------------
def _ref_forward(pooler_type, attention_mask, outputs: ModelOutputs):
    last_hidden = outputs.last_hidden_state
    hidden_states = outputs.hidden_states
    if pooler_type in ["cls_before_pooler", "cls"]:
        return last_hidden[:, 0]
    if pooler_type == "avg":
        return (last_hidden * attention_mask[:, :, None]).sum(1) / attention_mask.sum(
            -1
        )[:, None]
    if pooler_type == "avg_first_last":
        h = (hidden_states[0] + hidden_states[-1]) / 2.0
        return (h * attention_mask[:, :, None]).sum(1) / attention_mask.sum(-1)[:, None]
    if pooler_type == "avg_top2":
        h = (hidden_states[-2] + hidden_states[-1]) / 2.0
        return (h * attention_mask[:, :, None]).sum(1) / attention_mask.sum(-1)[:, None]
    raise NotImplementedError


if __name__ == "__main__":
    import numpy as np

    def _run_case(B, S, H, L, seed, rtol, atol):
        key = jax.random.PRNGKey(seed)
        k_hs, k_pool, k_len = jax.random.split(key, 3)

        hidden_states = tuple(
            jax.random.normal(jax.random.fold_in(k_hs, i), (B, S, H), dtype=jnp.float32)
            for i in range(L)
        )
        last_hidden = hidden_states[-1]
        pooler_output = jax.random.normal(k_pool, (B, H), dtype=jnp.float32)

        # attention mask: varying valid lengths per row (at least 1 valid token)
        lens = np.asarray(
            jax.random.randint(k_len, (B,), minval=1, maxval=S + 1)
        )
        attention_mask = jnp.asarray(
            (np.arange(S)[None, :] < lens[:, None]).astype(np.float32)
        )

        outputs = ModelOutputs(
            last_hidden_state=last_hidden,
            pooler_output=pooler_output,
            hidden_states=hidden_states,
        )

        for ptype in ["cls", "cls_before_pooler", "avg", "avg_first_last", "avg_top2"]:
            pooler = Pooler(ptype)
            got = jax.block_until_ready(pooler(attention_mask, outputs))
            want = _ref_forward(ptype, attention_mask, outputs)
            assert got.shape == (B, H), (ptype, got.shape)
            np.testing.assert_allclose(
                np.asarray(got), np.asarray(want), rtol=rtol, atol=atol
            )

    # Small shapes consistent with the module.
    _run_case(B=2, S=8, H=32, L=3, seed=0, rtol=1e-5, atol=1e-5)
    # Larger case exercising batch tiling (Bt=8) and sequence-tiled accumulation.
    _run_case(B=16, S=1024, H=128, L=3, seed=1, rtol=1e-4, atol=1e-4)

    print("KERNEL_OK")
</pallas_src>

<mosaic_0001>
module attributes {stable_mosaic.version = 11 : i64} {
  func.func @_cls_kernel(%arg0: i32, %arg1: memref<2x8x32xf32, #tpu.memory_space<vmem>>, %arg2: memref<2x32xf32, #tpu.memory_space<vmem>>) attributes {dimension_semantics = [#tpu.dimension_semantics<parallel>], iteration_bounds = array<i64: 1>, scalar_prefetch = 0 : i64, scratch_operands = 0 : i64, tpu.core_type = #tpu.core_type<tc>, window_params = [{transform_indices = @transform_0, window_bounds = array<i64: 2, 8, 32>}, {transform_indices = @transform_1, window_bounds = array<i64: 2, 32>}]} {
    %c0 = arith.constant 0 : index
    %c0_0 = arith.constant 0 : index
    %c0_1 = arith.constant 0 : index
    %0 = vector.load %arg1[%c0, %c0_0, %c0_1] : memref<2x8x32xf32, #tpu.memory_space<vmem>>, vector<2x1x32xf32>
    %1 = vector.shape_cast %0 : vector<2x1x32xf32> to vector<2x32xf32>
    %c0_2 = arith.constant 0 : index
    %c0_3 = arith.constant 0 : index
    %2 = vector.load %arg2[%c0_2, %c0_3] : memref<2x32xf32, #tpu.memory_space<vmem>>, vector<2x32xf32>
    tpu.vector_store %arg2[%c0_2, %c0_3], %1 {strides = array<i32>} : memref<2x32xf32, #tpu.memory_space<vmem>>, vector<2x32xf32>,
    return
  }
  func.func @transform_0(%arg0: i32) -> (i32, i32, i32) {
    %c0_i32 = arith.constant 0 : i32
    %c0_i32_0 = arith.constant 0 : i32
    %c0_i32_1 = arith.constant 0 : i32
    return %arg0, %c0_i32, %c0_i32_0 : i32, i32, i32
  }
  func.func @transform_1(%arg0: i32) -> (i32, i32) {
    %c0_i32 = arith.constant 0 : i32
    %c0_i32_0 = arith.constant 0 : i32
    return %arg0, %c0_i32 : i32, i32
  }
}

</mosaic_0001>

<llo_original>
// kernel: cls_pool.1
$region0: #{cls_pool.1}
  #allocation0 [shape = 'u32[]', space=smem, size = 0x4, offset = 0x4, fixed_abs, tag = 'smem constant byte address 0x4 - core index']
  #allocation1 [shape = 'u32[144,128]{1,0:T(1,128)}', space=vmem, size = 0x12000, scoped, tag = 'internal scratch']
  %s0 = inlined_call_operand.hbm [shape: f32[2,8,32], index: 0, kind: input, shape index: {}]
  %s1 = inlined_call_operand.hbm [shape: f32[2,32], index: 1, kind: output, shape index: {}]
  %s2 = sld [smem:[#allocation0]]
  $region18: #{cls_pool.1} parent=0
    _
  %s4 = ssub.s32 1, %s2
  %s5 = scalar_select 0, %s4, %s2
  $region1: #{cls_pool.1} parent=0
    #allocation2 [shape = 'u8[8192]{0}', space=vmem, size = 0x2000, scoped, tag = 'input window, operand 0, single buffered']
    #allocation3 [shape = 's32[1]{0}', space=sflag, size = 0x4, scoped, tag = 'scoped memory for cls_pool.1']
    #allocation4 [shape = 's32[1]{0}', space=sflag, size = 0x4, scoped, tag = 'scoped memory for cls_pool.1']
    #allocation5 [shape = 'u8[1024]{0}', space=vmem, size = 0x400, scoped, tag = 'output window, operand 0, single buffered']
    %6 = vsyncpa [#allocation3], 0
    %7 = vsyncpa [#allocation4], 0
    // Predicated region
    $region2: #{cls_pool.1} parent=1 // pred_check
      _
    $region3: #{cls_pool.1} parent=1 // pred_check_branch
      %9 = sbr.rel (0) target = $region5
    $region4: #{cls_pool.1} parent=1 // pred_region
      %s11 = ssub.s32 256, 256
      %12 = vsyncadd [#allocation3], %s11
      %s13 = sshll.u32 [#allocation2], 4
      %s14 = int_to_ptr.vmem [resolvable:$true] %s13
      %19 = dma.hbm_to_vmem [thread:$0]  %s0, 256, %s14, [#allocation3], 128, 128, 8
    $region5: #{cls_pool.1} parent=1 // pred_fallthru
      _
    // Predicated region
    $region6: #{cls_pool.1} parent=1 // pred_check
      _
    $region7: #{cls_pool.1} parent=1 // pred_check_branch
      %21 = sbr.rel (0) target = $region9
    $region8: #{cls_pool.1} parent=1 // pred_region
      %22 = dma.done [#allocation3], 256
    $region9: #{cls_pool.1} parent=1 // pred_fallthru
      _
    %v23 = vld [vmem:[#allocation2] sm:$0x1]
    %v24 = vld [vmem:[#allocation2 + $0x8] sm:$0x1]
    %v27 = vrot.slane %v24, 7
    %vm28 = vcmask 1041409
    %v29 = vsel %vm28, %v27, %v23
    %vm31 = vcmask 254976
    %32 = vst.msk [vmem:[#allocation5] sm:$0x3] %vm31, %v29
    // Predicated region
    $region10: #{cls_pool.1} parent=1 // pred_check
      _
    $region11: #{cls_pool.1} parent=1 // pred_check_branch
      %34 = sbr.rel (0) target = $region13
    $region12: #{cls_pool.1} parent=1 // pred_region
      %s36 = ssub.s32 32, 32
      %37 = vsyncadd [#allocation4], %s36
      %s39 = sshll.u32 [#allocation5], 4
      %s40 = int_to_ptr.vmem [resolvable:$true] %s39
      %42 = dma.vmem_to_hbm [thread:$0]  %s40, 32, %s1, [#allocation4]
    $region13: #{cls_pool.1} parent=1 // pred_fallthru
      _
    // Predicated region
    $region14: #{cls_pool.1} parent=1 // pred_check
      _
    $region15: #{cls_pool.1} parent=1 // pred_check_branch
      %44 = sbr.rel (0) target = $region17
    $region16: #{cls_pool.1} parent=1 // pred_region
      %45 = dma.done [#allocation4], 32
    $region17: #{cls_pool.1} parent=1 // pred_fallthru
      _
    %46 = vsyncpa [#allocation3], 1
    %47 = vsyncpa [#allocation4], 1

</llo_original>
